<compile_context>
chip_gen: v7x
topology: tpu7x:2x2x1
jax: 0.10.0
libtpu: 0.0.40
codegen_flags: <defaults>
</compile_context>

<pallas_src>
import jax
import jax.numpy as jnp
from jax.experimental import pallas as pl
from jax.experimental.pallas import tpu as pltpu

# ---- Config mirroring BaseModel with concat_method='concat' -----------------
ENT_DIM = 128
REL_DIM = 128
KG_DIM = ENT_DIM + REL_DIM + ENT_DIM      # compute_kg_dim() for 'concat'
NUM_ENT = 64
NUM_REL = 32
BATCH = 8
EPS = 1e-12                                # torch F.normalize default eps


def represent_triple_kernel(h_ref, r_ref, t_ref, ent_ref, rel_ref, out_ref):
    """Vectorized gather (one-hot matmul) + concat + L2 row-normalize.

    h_ref, r_ref, t_ref : (BATCH, 1) int32 in VMEM (triple indices as columns)
    ent_ref             : (NUM_ENT, ENT_DIM) f32 in VMEM
    rel_ref             : (NUM_REL, REL_DIM) f32 in VMEM
    out_ref             : (BATCH, KG_DIM)   f32 in VMEM
    """
    h_idx = h_ref[...]                      # (BATCH, 1)
    r_idx = r_ref[...]
    t_idx = t_ref[...]

    # One-hot selection matrices built on the VPU (iota + compare), then the
    # actual row gather is three small MXU matmuls — no scalar-dependent
    # dynamic loads, no masked partial stores.
    ent_iota = jax.lax.broadcasted_iota(jnp.int32, (BATCH, NUM_ENT), 1)
    rel_iota = jax.lax.broadcasted_iota(jnp.int32, (BATCH, NUM_REL), 1)
    onehot_h = (ent_iota == h_idx).astype(jnp.float32)   # (BATCH, NUM_ENT)
    onehot_r = (rel_iota == r_idx).astype(jnp.float32)   # (BATCH, NUM_REL)
    onehot_t = (ent_iota == t_idx).astype(jnp.float32)   # (BATCH, NUM_ENT)

    ent_tbl = ent_ref[...]
    rel_tbl = rel_ref[...]

    h_rows = jnp.dot(onehot_h, ent_tbl, preferred_element_type=jnp.float32)
    r_rows = jnp.dot(onehot_r, rel_tbl, preferred_element_type=jnp.float32)
    t_rows = jnp.dot(onehot_t, ent_tbl, preferred_element_type=jnp.float32)

    # Concatenate in vregs: (BATCH, 3*128) = 3 lane-aligned blocks.
    trip = jnp.concatenate([h_rows, r_rows, t_rows], axis=1)

    # nn.functional.normalize(p=2, dim=1): x / max(||x||_2, eps)
    # == x * rsqrt(max(||x||_2^2, eps^2))   (EPS^2 = 1e-24 is a normal f32)
    nrm_sq = jnp.sum(trip * trip, axis=1, keepdims=True)
    inv = jax.lax.rsqrt(jnp.maximum(nrm_sq, EPS * EPS))

    # Single full-width (384-lane, multiple of 128) unmasked store.
    out_ref[...] = trip * inv


def represent_triple(h, r, t, ent_weights, rel_weights):
    # Indices are fed as (BATCH, 1) int32 columns so the kernel can build the
    # one-hot gather matrices with a broadcasted compare (no SMEM scalar loop).
    h2 = h.reshape(BATCH, 1).astype(jnp.int32)
    r2 = r.reshape(BATCH, 1).astype(jnp.int32)
    t2 = t.reshape(BATCH, 1).astype(jnp.int32)
    return pl.pallas_call(
        represent_triple_kernel,
        out_shape=jax.ShapeDtypeStruct((BATCH, KG_DIM), jnp.float32),
        in_specs=[
            pl.BlockSpec(memory_space=pltpu.MemorySpace.VMEM),   # h indices
            pl.BlockSpec(memory_space=pltpu.MemorySpace.VMEM),   # r indices
            pl.BlockSpec(memory_space=pltpu.MemorySpace.VMEM),   # t indices
            pl.BlockSpec(memory_space=pltpu.MemorySpace.VMEM),   # entity table
            pl.BlockSpec(memory_space=pltpu.MemorySpace.VMEM),   # relation table
        ],
        out_specs=pl.BlockSpec(memory_space=pltpu.MemorySpace.VMEM),
    )(h2, r2, t2, ent_weights, rel_weights)


def represent_triple_ref(h, r, t, ent_weights, rel_weights):
    """Pure-JAX reference matching the PyTorch semantics."""
    trip = jnp.concatenate(
        [ent_weights[h], rel_weights[r], ent_weights[t]], axis=1)
    nrm = jnp.sqrt(jnp.sum(trip * trip, axis=1, keepdims=True))
    return trip / jnp.maximum(nrm, EPS)


# TODO(synk): normalize_embeddings()/'whiten' path needs torch.svd — no Pallas
# equivalent; forward() itself is a no-op in the reference module.

if __name__ == "__main__":
    key = jax.random.PRNGKey(0)
    k_ent, k_rel, k_h, k_r, k_t = jax.random.split(key, 5)

    # Deterministic "pretrained" embedding tables (create_emb_layer weights).
    ent_weights = jax.random.normal(k_ent, (NUM_ENT, ENT_DIM), dtype=jnp.float32)
    rel_weights = jax.random.normal(k_rel, (NUM_REL, REL_DIM), dtype=jnp.float32)

    # Triple indices (_h, _r, _t).
    h = jax.random.randint(k_h, (BATCH,), 0, NUM_ENT, dtype=jnp.int32)
    r = jax.random.randint(k_r, (BATCH,), 0, NUM_REL, dtype=jnp.int32)
    t = jax.random.randint(k_t, (BATCH,), 0, NUM_ENT, dtype=jnp.int32)

    out = represent_triple(h, r, t, ent_weights, rel_weights)
    out = jax.block_until_ready(out)

    ref = represent_triple_ref(h, r, t, ent_weights, rel_weights)
    assert out.shape == (BATCH, KG_DIM)
    assert jnp.allclose(out, ref, atol=1e-5, rtol=1e-5)

    print("KERNEL_OK")
</pallas_src>

<mosaic_0001>
module attributes {stable_mosaic.version = 11 : i64} {
  func.func @represent_triple_kernel(%arg0: memref<8x1xi32, #tpu.memory_space<vmem>>, %arg1: memref<8x1xi32, #tpu.memory_space<vmem>>, %arg2: memref<8x1xi32, #tpu.memory_space<vmem>>, %arg3: memref<64x128xf32, #tpu.memory_space<vmem>>, %arg4: memref<32x128xf32, #tpu.memory_space<vmem>>, %arg5: memref<8x384xf32, #tpu.memory_space<vmem>>) attributes {dimension_semantics = [], scalar_prefetch = 0 : i64, scratch_operands = 0 : i64, tpu.core_type = #tpu.core_type<tc>} {
    %c0 = arith.constant 0 : index
    %c0_0 = arith.constant 0 : index
    %0 = vector.load %arg0[%c0, %c0_0] : memref<8x1xi32, #tpu.memory_space<vmem>>, vector<8x1xi32>
    %c0_1 = arith.constant 0 : index
    %c0_2 = arith.constant 0 : index
    %1 = vector.load %arg1[%c0_1, %c0_2] : memref<8x1xi32, #tpu.memory_space<vmem>>, vector<8x1xi32>
    %c0_3 = arith.constant 0 : index
    %c0_4 = arith.constant 0 : index
    %2 = vector.load %arg2[%c0_3, %c0_4] : memref<8x1xi32, #tpu.memory_space<vmem>>, vector<8x1xi32>
    %3 = tpu.iota {dimensions = array<i32: 1>} : vector<8x64xi32>
    %4 = tpu.iota {dimensions = array<i32: 1>} : vector<8x32xi32>
    %5 = vector.broadcast %0 : vector<8x1xi32> to vector<8x64xi32>
    %6 = arith.cmpi eq, %3, %5 : vector<8x64xi32>
    %7 = arith.extui %6 : vector<8x64xi1> to vector<8x64xi32>
    %8 = arith.sitofp %7 : vector<8x64xi32> to vector<8x64xf32>
    %9 = vector.broadcast %1 : vector<8x1xi32> to vector<8x32xi32>
    %10 = arith.cmpi eq, %4, %9 : vector<8x32xi32>
    %11 = arith.extui %10 : vector<8x32xi1> to vector<8x32xi32>
    %12 = arith.sitofp %11 : vector<8x32xi32> to vector<8x32xf32>
    %13 = vector.broadcast %2 : vector<8x1xi32> to vector<8x64xi32>
    %14 = arith.cmpi eq, %3, %13 : vector<8x64xi32>
    %15 = arith.extui %14 : vector<8x64xi1> to vector<8x64xi32>
    %16 = arith.sitofp %15 : vector<8x64xi32> to vector<8x64xf32>
    %c0_5 = arith.constant 0 : index
    %c0_6 = arith.constant 0 : index
    %17 = vector.load %arg3[%c0_5, %c0_6] : memref<64x128xf32, #tpu.memory_space<vmem>>, vector<64x128xf32>
    %c0_7 = arith.constant 0 : index
    %c0_8 = arith.constant 0 : index
    %18 = vector.load %arg4[%c0_7, %c0_8] : memref<32x128xf32, #tpu.memory_space<vmem>>, vector<32x128xf32>
    %cst = arith.constant dense<0.000000e+00> : vector<8x128xf32>
    %19 = tpu.matmul %8, %17, %cst {dimension_numbers = #tpu.dot_dimension_numbers<[1], [0], [0], [1], [0, 0, 1, 1], [], []>} : vector<8x64xf32>, vector<64x128xf32>, vector<8x128xf32> -> vector<8x128xf32>
    %cst_9 = arith.constant dense<0.000000e+00> : vector<8x128xf32>
    %20 = tpu.matmul %12, %18, %cst_9 {dimension_numbers = #tpu.dot_dimension_numbers<[1], [0], [0], [1], [0, 0, 1, 1], [], []>} : vector<8x32xf32>, vector<32x128xf32>, vector<8x128xf32> -> vector<8x128xf32>
    %cst_10 = arith.constant dense<0.000000e+00> : vector<8x128xf32>
    %21 = tpu.matmul %16, %17, %cst_10 {dimension_numbers = #tpu.dot_dimension_numbers<[1], [0], [0], [1], [0, 0, 1, 1], [], []>} : vector<8x64xf32>, vector<64x128xf32>, vector<8x128xf32> -> vector<8x128xf32>
    %22 = tpu.concatenate %19, %20, %21 in 1 : vector<8x128xf32>, vector<8x128xf32>, vector<8x128xf32> -> vector<8x384xf32>
    %23 = arith.mulf %22, %22 : vector<8x384xf32>
    %cst_11 = arith.constant dense<0.000000e+00> : vector<8xf32>
    %24 = vector.multi_reduction <add>, %23, %cst_11 [1] : vector<8x384xf32> to vector<8xf32>
    %25 = vector.shape_cast %24 : vector<8xf32> to vector<8x1xf32>
    %cst_12 = arith.constant 1.000000e-24 : f32
    %26 = vector.broadcast %cst_12 : f32 to vector<8x1xf32>
    %27 = arith.maximumf %25, %26 : vector<8x1xf32>
    %28 = math.rsqrt %27 : vector<8x1xf32>
    %29 = vector.broadcast %28 : vector<8x1xf32> to vector<8x384xf32>
    %30 = arith.mulf %22, %29 : vector<8x384xf32>
    %c0_13 = arith.constant 0 : index
    %c0_14 = arith.constant 0 : index
    %31 = vector.load %arg5[%c0_13, %c0_14] : memref<8x384xf32, #tpu.memory_space<vmem>>, vector<8x384xf32>
    tpu.vector_store %arg5[%c0_13, %c0_14], %30 {strides = array<i32>} : memref<8x384xf32, #tpu.memory_space<vmem>>, vector<8x384xf32>,
    return
  }
}

</mosaic_0001>

<llo_original>
// kernel: tpu_custom_call.1
$region0: #{tpu_custom_call.1}
  #allocation0 [shape = 'u32[]', space=smem, size = 0x4, offset = 0x4, fixed_abs, tag = 'smem constant byte address 0x4 - core index']
  #allocation1 [shape = 'u32[144,128]{1,0:T(1,128)}', space=vmem, size = 0x12000, scoped, tag = 'internal scratch']
  %s0 = inlined_call_operand.vmem [shape: s32[8,1], index: 0, kind: input, shape index: {}]
  %s1 = inlined_call_operand.vmem [shape: s32[8,1], index: 1, kind: input, shape index: {}]
  %s2 = inlined_call_operand.vmem [shape: s32[8,1], index: 2, kind: input, shape index: {}]
  %s3 = inlined_call_operand.hbm [shape: f32[64,128], index: 3, kind: input, shape index: {}]
  %s4 = inlined_call_operand.vmem [shape: f32[32,128], index: 4, kind: input, shape index: {}]
  %s5 = inlined_call_operand.hbm [shape: f32[8,384], index: 5, kind: output, shape index: {}]
  %s6 = sld [smem:[#allocation0]]
  $region34: #{tpu_custom_call.1} parent=0
    _
  %s8 = ssub.s32 1, %s6
  %s9 = scalar_select 0, %s8, %s6
  $region1: #{tpu_custom_call.1} parent=0
    #allocation2 [shape = 'u8[32768]{0}', space=vmem, size = 0x8000, scoped, tag = 'input window, operand 3, single buffered']
    #allocation3 [shape = 's32[1]{0}', space=sflag, size = 0x4, scoped, tag = 'scoped memory for tpu_custom_call.1']
    #allocation4 [shape = 's32[1]{0}', space=sflag, size = 0x4, scoped, tag = 'scoped memory for tpu_custom_call.1']
    #allocation5 [shape = 'u8[12288]{0}', space=vmem, size = 0x3000, scoped, tag = 'output window, operand 0, single buffered']
    %10 = vsyncpa [#allocation3], 0
    %11 = vsyncpa [#allocation4], 0
    // Predicated region
    $region2: #{tpu_custom_call.1} parent=1 // pred_check
      _
    $region3: #{tpu_custom_call.1} parent=1 // pred_check_branch
      %13 = sbr.rel (0) target = $region5
    $region4: #{tpu_custom_call.1} parent=1 // pred_region
      _
    $region5: #{tpu_custom_call.1} parent=1 // pred_fallthru
      _
    // Predicated region
    $region6: #{tpu_custom_call.1} parent=1 // pred_check
      _
    $region7: #{tpu_custom_call.1} parent=1 // pred_check_branch
      %15 = sbr.rel (0) target = $region9
    $region8: #{tpu_custom_call.1} parent=1 // pred_region
      _
    $region9: #{tpu_custom_call.1} parent=1 // pred_fallthru
      _
    // Predicated region
    $region10: #{tpu_custom_call.1} parent=1 // pred_check
      _
    $region11: #{tpu_custom_call.1} parent=1 // pred_check_branch
      %17 = sbr.rel (0) target = $region13
    $region12: #{tpu_custom_call.1} parent=1 // pred_region
      _
    $region13: #{tpu_custom_call.1} parent=1 // pred_fallthru
      _
    // Predicated region
    $region14: #{tpu_custom_call.1} parent=1 // pred_check
      _
    $region15: #{tpu_custom_call.1} parent=1 // pred_check_branch
      %19 = sbr.rel (0) target = $region17
    $region16: #{tpu_custom_call.1} parent=1 // pred_region
      %s21 = ssub.s32 1024, 1024
      %22 = vsyncadd [#allocation3], %s21
      %s23 = sshll.u32 [#allocation2], 4
      %s24 = int_to_ptr.vmem [resolvable:$true] %s23
      %29 = dma.hbm_to_vmem [thread:$0]  %s3, 1024, %s24, [#allocation3], 128, 128, 8
    $region17: #{tpu_custom_call.1} parent=1 // pred_fallthru
      _
    // Predicated region
    $region18: #{tpu_custom_call.1} parent=1 // pred_check
      _
    $region19: #{tpu_custom_call.1} parent=1 // pred_check_branch
      %31 = sbr.rel (0) target = $region21
    $region20: #{tpu_custom_call.1} parent=1 // pred_region
      _
    $region21: #{tpu_custom_call.1} parent=1 // pred_fallthru
      _
    // Predicated region
    $region22: #{tpu_custom_call.1} parent=1 // pred_check
      _
    $region23: #{tpu_custom_call.1} parent=1 // pred_check_branch
      %33 = sbr.rel (0) target = $region25
    $region24: #{tpu_custom_call.1} parent=1 // pred_region
      %34 = dma.done [#allocation3], 1024
    $region25: #{tpu_custom_call.1} parent=1 // pred_fallthru
      _
    %v35 = vld [vmem:[%s0] sm:$0xff]
    %v36 = vld [vmem:[%s1] sm:$0xff]
    %v37 = vld [vmem:[%s2] sm:$0xff]
    %v38 = vlaneseq
    %v39 = vand.u32 %v38, 127
    %40 = vset.pattern.permute.xlu0 0
    %41 = vperm.xlu0 %40, %v35
    %v42 = vpop.permute.xlu0 %41
    %vm43 = vcmp.eq.s32.totalorder %v39, %v42
    %v44 = vsel %vm43, 1, 0
    %v45 = vcvt.s32.f32 %v44
    %46 = vset.pattern.permute.xlu0 0
    %47 = vperm.xlu0 %46, %v36
    %v48 = vpop.permute.xlu0 %47
    %vm49 = vcmp.eq.s32.totalorder %v39, %v48
    %v50 = vsel %vm49, 1, 0
    %v51 = vcvt.s32.f32 %v50
    %52 = vset.pattern.permute.xlu0 0
    %53 = vperm.xlu0 %52, %v37
    %v54 = vpop.permute.xlu0 %53
    %vm55 = vcmp.eq.s32.totalorder %v39, %v54
    %v56 = vsel %vm55, 1, 0
    %v57 = vcvt.s32.f32 %v56
    %v58 = vld [vmem:[#allocation2] sm:$0xff]
    %v59 = vld [vmem:[#allocation2 + $0x8] sm:$0xff]
    %v60 = vld [vmem:[#allocation2 + $0x10] sm:$0xff]
    %v61 = vld [vmem:[#allocation2 + $0x18] sm:$0xff]
    %v62 = vld [vmem:[#allocation2 + $0x20] sm:$0xff]
    %v63 = vld [vmem:[#allocation2 + $0x28] sm:$0xff]
    %v64 = vld [vmem:[#allocation2 + $0x30] sm:$0xff]
    %v65 = vld [vmem:[#allocation2 + $0x38] sm:$0xff]
    %v66 = vld [vmem:[%s4] sm:$0xff]
    %v67 = vld [vmem:[%s4 + $0x8] sm:$0xff]
    %v68 = vld [vmem:[%s4 + $0x10] sm:$0xff]
    %v69 = vld [vmem:[%s4 + $0x18] sm:$0xff]
    %vm70 = vcmask 523264
    %v72 = vsel %vm70, %v45, 0
    %74 = vmatprep.subr.mxu0 0.0
    %75 = vmatpush1.msra.mxu0 %v58
    %76 = vmatprep.subr.mxu0 0.0
    %77 = vmatpush1.msra.mxu0 %v59
    %78 = vmatprep.subr.mxu0 0.0
    %79 = vmatpush1.msra.mxu0 %v60
    %80 = vmatprep.subr.mxu0 0.0
    %81 = vmatpush1.msra.mxu0 %v61
    %82 = vmatprep.subr.mxu0 0.0
    %83 = vmatpush1.msra.mxu0 %v62
    %84 = vmatprep.subr.mxu0 0.0
    %85 = vmatpush1.msra.mxu0 %v63
    %86 = vmatprep.subr.mxu0 0.0
    %87 = vmatpush1.msra.mxu0 %v64
    %88 = vmatprep.subr.mxu0 0.0
    %89 = vmatpush1.msra.mxu0 %v65
    %90 = vmatprep.subr.mxu0 0.0
    %91 = vmatpush1.msra.mxu0 0.0
    %92 = vmatprep.subr.mxu0 0.0
    %93 = vmatpush1.msra.mxu0 0.0
    %94 = vmatprep.subr.mxu0 0.0
    %95 = vmatpush1.msra.mxu0 0.0
    %96 = vmatprep.subr.mxu0 0.0
    %97 = vmatpush1.msra.mxu0 0.0
    %98 = vmatprep.subr.mxu0 0.0
    %99 = vmatpush1.msra.mxu0 0.0
    %100 = vmatprep.subr.mxu0 0.0
    %101 = vmatpush1.msra.mxu0 0.0
    %102 = vmatprep.subr.mxu0 0.0
    %103 = vmatpush1.msra.mxu0 0.0
    %104 = vmatprep.subr.mxu0 0.0
    %105 = vmatpush1.msra.mxu0 0.0
    %106 = vmatprep.subr.mxu0 0.0
    %107 = vmatpush1.msra.mxu0 0.0
    %108 = vmatprep.subr.mxu0 0.0
    %109 = vmatpush1.msra.mxu0 0.0
    %110 = vmatprep.subr.mxu0 0.0
    %111 = vmatpush1.msra.mxu0 0.0
    %112 = vmatprep.subr.mxu0 0.0
    %113 = vmatpush1.msra.mxu0 0.0
    %114 = vmatprep.subr.mxu0 0.0
    %115 = vmatpush1.msra.mxu0 0.0
    %116 = vmatprep.subr.mxu0 0.0
    %117 = vmatpush1.msra.mxu0 0.0
    %118 = vmatprep.subr.mxu0 0.0
    %119 = vmatpush1.msra.mxu0 0.0
    %120 = vmatprep.subr.mxu0 0.0
    %121 = vmatpush1.msra.mxu0 0.0
    %122 = vmatprep.subr.mxu0 0.0
    %123 = vmatpush1.msra.mxu0 0.0
    %124 = vmatprep.subr.mxu0 0.0
    %125 = vmatpush1.msra.mxu0 0.0
    %126 = vmatprep.subr.mxu0 0.0
    %127 = vmatpush1.msra.mxu0 0.0
    %128 = vmatprep.subr.mxu0 0.0
    %129 = vmatpush1.msra.mxu0 0.0
    %130 = vmatprep.subr.mxu0 0.0
    %131 = vmatpush1.msra.mxu0 0.0
    %132 = vmatprep.subr.mxu0 0.0
    %133 = vmatpush1.msra.mxu0 0.0
    %134 = vmatprep.subr.mxu0 0.0
    %135 = vmatpush1.msra.mxu0 0.0
    %136 = vmatprep.subr.mxu0 0.0
    %137 = vmatpush1.msra.mxu0 0.0
    %138 = vmatprep.mubr.f32.mxu0 0.0
    %139 = vmatmul.mubr.f32.gmra.mrb[0].mxu0 %v72
    %v140 = vpop.f32.mrb[0].mxu0
    %v141 = vadd.f32 0.0, %v140
    %v142 = vpop.f32.mrb[0].mxu0
    %143 = vdwg.mxu0
    %vm144 = vcmask 261120
    %v146 = vsel %vm144, %v51, 0
    %148 = vmatprep.subr.mxu0 0.0
    %149 = vmatpush1.msra.mxu0 %v66
    %150 = vmatprep.subr.mxu0 0.0
    %151 = vmatpush1.msra.mxu0 %v67
    %152 = vmatprep.subr.mxu0 0.0
    %153 = vmatpush1.msra.mxu0 %v68
    %154 = vmatprep.subr.mxu0 0.0
    %155 = vmatpush1.msra.mxu0 %v69
    %156 = vmatprep.subr.mxu0 0.0
    %157 = vmatpush1.msra.mxu0 0.0
    %158 = vmatprep.subr.mxu0 0.0
    %159 = vmatpush1.msra.mxu0 0.0
    %160 = vmatprep.subr.mxu0 0.0
    %161 = vmatpush1.msra.mxu0 0.0
    %162 = vmatprep.subr.mxu0 0.0
    %163 = vmatpush1.msra.mxu0 0.0
    %164 = vmatprep.subr.mxu0 0.0
    %165 = vmatpush1.msra.mxu0 0.0
    %166 = vmatprep.subr.mxu0 0.0
    %167 = vmatpush1.msra.mxu0 0.0
    %168 = vmatprep.subr.mxu0 0.0
    %169 = vmatpush1.msra.mxu0 0.0
    %170 = vmatprep.subr.mxu0 0.0
    %171 = vmatpush1.msra.mxu0 0.0
    %172 = vmatprep.subr.mxu0 0.0
    %173 = vmatpush1.msra.mxu0 0.0
    %174 = vmatprep.subr.mxu0 0.0
    %175 = vmatpush1.msra.mxu0 0.0
    %176 = vmatprep.subr.mxu0 0.0
    %177 = vmatpush1.msra.mxu0 0.0
    %178 = vmatprep.subr.mxu0 0.0
    %179 = vmatpush1.msra.mxu0 0.0
    %180 = vmatprep.subr.mxu0 0.0
    %181 = vmatpush1.msra.mxu0 0.0
    %182 = vmatprep.subr.mxu0 0.0
    %183 = vmatpush1.msra.mxu0 0.0
    %184 = vmatprep.subr.mxu0 0.0
    %185 = vmatpush1.msra.mxu0 0.0
    %186 = vmatprep.subr.mxu0 0.0
    %187 = vmatpush1.msra.mxu0 0.0
    %188 = vmatprep.subr.mxu0 0.0
    %189 = vmatpush1.msra.mxu0 0.0
    %190 = vmatprep.subr.mxu0 0.0
    %191 = vmatpush1.msra.mxu0 0.0
    %192 = vmatprep.subr.mxu0 0.0
    %193 = vmatpush1.msra.mxu0 0.0
    %194 = vmatprep.subr.mxu0 0.0
    %195 = vmatpush1.msra.mxu0 0.0
    %196 = vmatprep.subr.mxu0 0.0
    %197 = vmatpush1.msra.mxu0 0.0
    %198 = vmatprep.subr.mxu0 0.0
    %199 = vmatpush1.msra.mxu0 0.0
    %200 = vmatprep.subr.mxu0 0.0
    %201 = vmatpush1.msra.mxu0 0.0
    %202 = vmatprep.subr.mxu0 0.0
    %203 = vmatpush1.msra.mxu0 0.0
    %204 = vmatprep.subr.mxu0 0.0
    %205 = vmatpush1.msra.mxu0 0.0
    %206 = vmatprep.subr.mxu0 0.0
    %207 = vmatpush1.msra.mxu0 0.0
    %208 = vmatprep.subr.mxu0 0.0
    %209 = vmatpush1.msra.mxu0 0.0
    %210 = vmatprep.subr.mxu0 0.0
    %211 = vmatpush1.msra.mxu0 0.0
    %212 = vmatprep.mubr.f32.mxu0 0.0
    %213 = vmatmul.mubr.f32.gmra.mrb[0].mxu0 %v146
    %v214 = vpop.f32.mrb[0].mxu0
    %v215 = vadd.f32 0.0, %v214
    %v216 = vpop.f32.mrb[0].mxu0
    %217 = vdwg.mxu0
    %v219 = vsel %vm70, %v57, 0
    %221 = vmatprep.subr.mxu0 0.0
    %222 = vmatpush1.msra.mxu0 %v58
    %223 = vmatprep.subr.mxu0 0.0
    %224 = vmatpush1.msra.mxu0 %v59
    %225 = vmatprep.subr.mxu0 0.0
    %226 = vmatpush1.msra.mxu0 %v60
    %227 = vmatprep.subr.mxu0 0.0
    %228 = vmatpush1.msra.mxu0 %v61
    %229 = vmatprep.subr.mxu0 0.0
    %230 = vmatpush1.msra.mxu0 %v62
    %231 = vmatprep.subr.mxu0 0.0
    %232 = vmatpush1.msra.mxu0 %v63
    %233 = vmatprep.subr.mxu0 0.0
    %234 = vmatpush1.msra.mxu0 %v64
    %235 = vmatprep.subr.mxu0 0.0
    %236 = vmatpush1.msra.mxu0 %v65
    %237 = vmatprep.subr.mxu0 0.0
    %238 = vmatpush1.msra.mxu0 0.0
    %239 = vmatprep.subr.mxu0 0.0
    %240 = vmatpush1.msra.mxu0 0.0
    %241 = vmatprep.subr.mxu0 0.0
    %242 = vmatpush1.msra.mxu0 0.0
    %243 = vmatprep.subr.mxu0 0.0
    %244 = vmatpush1.msra.mxu0 0.0
    %245 = vmatprep.subr.mxu0 0.0
    %246 = vmatpush1.msra.mxu0 0.0
    %247 = vmatprep.subr.mxu0 0.0
    %248 = vmatpush1.msra.mxu0 0.0
    %249 = vmatprep.subr.mxu0 0.0
    %250 = vmatpush1.msra.mxu0 0.0
    %251 = vmatprep.subr.mxu0 0.0
    %252 = vmatpush1.msra.mxu0 0.0
    %253 = vmatprep.subr.mxu0 0.0
    %254 = vmatpush1.msra.mxu0 0.0
    %255 = vmatprep.subr.mxu0 0.0
    %256 = vmatpush1.msra.mxu0 0.0
    %257 = vmatprep.subr.mxu0 0.0
    %258 = vmatpush1.msra.mxu0 0.0
    %259 = vmatprep.subr.mxu0 0.0
    %260 = vmatpush1.msra.mxu0 0.0
    %261 = vmatprep.subr.mxu0 0.0
    %262 = vmatpush1.msra.mxu0 0.0
    %263 = vmatprep.subr.mxu0 0.0
    %264 = vmatpush1.msra.mxu0 0.0
    %265 = vmatprep.subr.mxu0 0.0
    %266 = vmatpush1.msra.mxu0 0.0
    %267 = vmatprep.subr.mxu0 0.0
    %268 = vmatpush1.msra.mxu0 0.0
    %269 = vmatprep.subr.mxu0 0.0
    %270 = vmatpush1.msra.mxu0 0.0
    %271 = vmatprep.subr.mxu0 0.0
    %272 = vmatpush1.msra.mxu0 0.0
    %273 = vmatprep.subr.mxu0 0.0
    %274 = vmatpush1.msra.mxu0 0.0
    %275 = vmatprep.subr.mxu0 0.0
    %276 = vmatpush1.msra.mxu0 0.0
    %277 = vmatprep.subr.mxu0 0.0
    %278 = vmatpush1.msra.mxu0 0.0
    %279 = vmatprep.subr.mxu0 0.0
    %280 = vmatpush1.msra.mxu0 0.0
    %281 = vmatprep.subr.mxu0 0.0
    %282 = vmatpush1.msra.mxu0 0.0
    %283 = vmatprep.subr.mxu0 0.0
    %284 = vmatpush1.msra.mxu0 0.0
    %285 = vmatprep.mubr.f32.mxu0 0.0
    %286 = vmatmul.mubr.f32.gmra.mrb[0].mxu0 %v219
    %v287 = vpop.f32.mrb[0].mxu0
    %v288 = vadd.f32 0.0, %v287
    %v289 = vpop.f32.mrb[0].mxu0
    %290 = vdwg.mxu0
    %v291 = vmul.f32 %v141, %v141
    %v292 = vmul.f32 %v215, %v215
    %v293 = vmul.f32 %v288, %v288
    %v294 = vadd.f32 %v291, %v292
    %v295 = vadd.f32 %v294, %v293
    %296 = vadd.xlane.f32.xlu0 %v295
    %v297 = vpop.xlane.xlu0 %296
    %v298 = vmax.f32 %v297, 1e-24
    %v299 = vrsqrt.pop %v298
    %v300 = vmul.f32 %v141, %v299
    %v301 = vmul.f32 %v215, %v299
    %v302 = vmul.f32 %v288, %v299
    %303 = vst [vmem:[#allocation5] sm:$0xff] %v300
    %304 = vst [vmem:[#allocation5 + $0x8] sm:$0xff] %v301
    %305 = vst [vmem:[#allocation5 + $0x10] sm:$0xff] %v302
    // Predicated region
    $region26: #{tpu_custom_call.1} parent=1 // pred_check
      _
    $region27: #{tpu_custom_call.1} parent=1 // pred_check_branch
      %307 = sbr.rel (0) target = $region29
    $region28: #{tpu_custom_call.1} parent=1 // pred_region
      %s309 = ssub.s32 384, 384
      %310 = vsyncadd [#allocation4], %s309
      %s312 = sshll.u32 [#allocation5], 4
      %s313 = int_to_ptr.vmem [resolvable:$true] %s312
      %315 = dma.vmem_to_hbm [thread:$0]  %s313, 384, %s5, [#allocation4]
    $region29: #{tpu_custom_call.1} parent=1 // pred_fallthru
      _
    // Predicated region
    $region30: #{tpu_custom_call.1} parent=1 // pred_check
      _
    $region31: #{tpu_custom_call.1} parent=1 // pred_check_branch
      %317 = sbr.rel (0) target = $region33
    $region32: #{tpu_custom_call.1} parent=1 // pred_region
      %318 = dma.done [#allocation4], 384
    $region33: #{tpu_custom_call.1} parent=1 // pred_fallthru
      _
    %319 = vsyncpa [#allocation3], 1
    %320 = vsyncpa [#allocation4], 1

</llo_original>
